<compile_context>
chip_gen: v7x
topology: tpu7x:2x2x1
jax: 0.10.0
libtpu: 0.0.40
codegen_flags: <defaults>
</compile_context>

<pallas_src>
import functools

import jax
import jax.numpy as jnp
import numpy as np
from jax.experimental import pallas as pl
from jax.experimental.pallas import tpu as pltpu

K = 3  # conv kernel size; padding = K // 2 ('same')


def _fusion_kernel(ti_ref, ci_ref, w_ref, b_ref, m_ref, o_ref, *, W, HW):
    """One grid step == one batch element.

    ti_ref, ci_ref : (1, C, HW)   VMEM  flattened NCHW inputs (HW = H*W)
    w_ref          : (K*K, C, C)  VMEM  w_ref[ky*K+kx] = conv.weight[:, :, ky, kx]
    b_ref          : (C, 1)       VMEM  conv bias (column vector)
    m_ref          : (K*K, 1, HW) VMEM  0/1 border-validity mask per tap
    o_ref          : (1, C, HW)   VMEM
    """
    # Hadamard product = conv input; small (C, HW) f32 plane kept in vregs.
    h = (ti_ref[0] * ci_ref[0]).astype(jnp.float32)              # (C, HW)

    partials = []
    for ky in range(K):
        dy = ky - K // 2
        acc = None
        for kx in range(K):
            dx = kx - K // 2
            t = ky * K + kx
            s = dy * W + dx                                      # flat-index shift
            # shifted[p] = h[p + s]; wrap-around values are zeroed by the mask.
            shifted = h if s == 0 else pltpu.roll(h, shift=(-s) % HW, axis=1)
            masked = shifted * m_ref[t]                          # (C,HW) * (1,HW)
            tap = jnp.dot(w_ref[t], masked,
                          preferred_element_type=jnp.float32)    # MXU (C,C)@(C,HW)
            acc = tap if acc is None else acc + tap
        partials.append(acc)
    # Small balanced sum of the per-row partials.
    conv = partials[0] + partials[1] + partials[2]

    o_ref[0] = (conv + b_ref[...]).astype(o_ref.dtype)


def _tap_masks(H, W):
    """(K*K, 1, H*W) f32 masks: 1 where the shifted tap stays inside the image."""
    row = np.arange(H).reshape(H, 1)
    col = np.arange(W).reshape(1, W)
    masks = []
    for ky in range(K):
        for kx in range(K):
            dy, dx = ky - K // 2, kx - K // 2
            valid = ((row + dy >= 0) & (row + dy < H)
                     & (col + dx >= 0) & (col + dx < W))
            masks.append(valid.astype(np.float32).reshape(1, H * W))
    return jnp.asarray(np.stack(masks, axis=0))


def multimodal_fusion(ti, ci, conv_w, conv_b):
    """ti, ci: (N, C, H, W); conv_w: (C, C, K, K) OIHW; conv_b: (C,)."""
    N, C, H, W = ti.shape
    HW = H * W

    # Lane-dense layout for kernel I/O.
    ti_f = ti.reshape(N, C, HW)
    ci_f = ci.reshape(N, C, HW)
    # Tap-major weights: (K*K, C_out, C_in).
    w_taps = jnp.transpose(conv_w, (2, 3, 0, 1)).reshape(K * K, C, C)
    w_taps = w_taps.astype(jnp.float32)
    b_col = conv_b.reshape(C, 1).astype(jnp.float32)
    masks = _tap_masks(H, W)

    kernel = functools.partial(_fusion_kernel, W=W, HW=HW)

    out_flat = pl.pallas_call(
        kernel,
        out_shape=jax.ShapeDtypeStruct((N, C, HW), ti.dtype),
        grid=(N,),
        in_specs=[
            pl.BlockSpec((1, C, HW), lambda n: (n, 0, 0)),        # ti
            pl.BlockSpec((1, C, HW), lambda n: (n, 0, 0)),        # ci
            pl.BlockSpec((K * K, C, C), lambda n: (0, 0, 0)),     # conv weights
            pl.BlockSpec((C, 1), lambda n: (0, 0)),               # bias
            pl.BlockSpec((K * K, 1, HW), lambda n: (0, 0, 0)),    # border masks
        ],
        out_specs=pl.BlockSpec((1, C, HW), lambda n: (n, 0, 0)),
        compiler_params=pltpu.CompilerParams(
            dimension_semantics=("parallel",),
            # Blocks are tiny here; explicit cap keeps v5e (16 MiB default
            # scoped VMEM) safe if shapes are scaled up.
            vmem_limit_bytes=32 * 1024 * 1024,
        ),
    )(ti_f, ci_f, w_taps, b_col, masks)

    return out_flat.reshape(N, C, H, W)


def reference(ti, ci, conv_w, conv_b):
    """Pure-JAX reference mirroring the PyTorch forward."""
    h = ti * ci
    conv = jax.lax.conv_general_dilated(
        h, conv_w, window_strides=(1, 1),
        padding=((K // 2, K // 2), (K // 2, K // 2)),
        dimension_numbers=("NCHW", "OIHW", "NCHW"))
    return conv + conv_b.reshape(1, -1, 1, 1)


if __name__ == "__main__":
    key = jax.random.PRNGKey(0)
    k_ti, k_ci, k_w, k_b = jax.random.split(key, 4)

    N, C, H, W = 2, 4, 16, 16
    ti = jax.random.normal(k_ti, (N, C, H, W), dtype=jnp.float32)
    ci = jax.random.normal(k_ci, (N, C, H, W), dtype=jnp.float32)

    # Deterministic parameter init (shapes from the module's __init__):
    #   conv.weight : (C, C, 3, 3), conv.bias : (C,)
    conv_w = 0.05 * jax.random.normal(k_w, (C, C, K, K), dtype=jnp.float32)
    conv_b = 0.05 * jax.random.normal(k_b, (C,), dtype=jnp.float32)

    out = multimodal_fusion(ti, ci, conv_w, conv_b)
    out = jax.block_until_ready(out)

    ref = reference(ti, ci, conv_w, conv_b)
    assert out.shape == ti.shape and out.dtype == ti.dtype
    err = jnp.max(jnp.abs(out - ref))
    assert jnp.allclose(out, ref, atol=1e-5, rtol=1e-5), f"max abs err {err}"

    print("KERNEL_OK")
</pallas_src>

<mosaic_0001>
module attributes {stable_mosaic.version = 11 : i64} {
  func.func @_fusion_kernel(%arg0: i32, %arg1: memref<1x4x256xf32, #tpu.memory_space<vmem>>, %arg2: memref<1x4x256xf32, #tpu.memory_space<vmem>>, %arg3: memref<9x4x4xf32, #tpu.memory_space<vmem>>, %arg4: memref<4x1xf32, #tpu.memory_space<vmem>>, %arg5: memref<9x1x256xf32, #tpu.memory_space<vmem>>, %arg6: memref<1x4x256xf32, #tpu.memory_space<vmem>>) attributes {dimension_semantics = [#tpu.dimension_semantics<parallel>], iteration_bounds = array<i64: 2>, scalar_prefetch = 0 : i64, scratch_operands = 0 : i64, tpu.core_type = #tpu.core_type<tc>, window_params = [{transform_indices = @transform_0, window_bounds = array<i64: 1, 4, 256>}, {transform_indices = @transform_1, window_bounds = array<i64: 1, 4, 256>}, {pipeline_mode = #tpu.pipeline_mode<synchronous>, transform_indices = @transform_2, window_bounds = array<i64: 9, 4, 4>}, {pipeline_mode = #tpu.pipeline_mode<synchronous>, transform_indices = @transform_3, window_bounds = array<i64: 4, 1>}, {pipeline_mode = #tpu.pipeline_mode<synchronous>, transform_indices = @transform_4, window_bounds = array<i64: 9, 1, 256>}, {transform_indices = @transform_5, window_bounds = array<i64: 1, 4, 256>}]} {
    %c0 = arith.constant 0 : index
    %c0_0 = arith.constant 0 : index
    %c0_1 = arith.constant 0 : index
    %0 = vector.load %arg1[%c0, %c0_0, %c0_1] : memref<1x4x256xf32, #tpu.memory_space<vmem>>, vector<1x4x256xf32>
    %1 = vector.shape_cast %0 : vector<1x4x256xf32> to vector<4x256xf32>
    %c0_2 = arith.constant 0 : index
    %c0_3 = arith.constant 0 : index
    %c0_4 = arith.constant 0 : index
    %2 = vector.load %arg2[%c0_2, %c0_3, %c0_4] : memref<1x4x256xf32, #tpu.memory_space<vmem>>, vector<1x4x256xf32>
    %3 = vector.shape_cast %2 : vector<1x4x256xf32> to vector<4x256xf32>
    %4 = arith.mulf %1, %3 : vector<4x256xf32>
    %c17_i32 = arith.constant 17 : i32
    %5 = tpu.dynamic_rotate %4 by %c17_i32 dim 1 : vector<4x256xf32>, i32 -> vector<4x256xf32>
    %c0_5 = arith.constant 0 : index
    %c0_6 = arith.constant 0 : index
    %c0_7 = arith.constant 0 : index
    %6 = vector.load %arg5[%c0_5, %c0_6, %c0_7] : memref<9x1x256xf32, #tpu.memory_space<vmem>>, vector<1x1x256xf32>
    %7 = vector.shape_cast %6 : vector<1x1x256xf32> to vector<1x256xf32>
    %8 = vector.broadcast %7 : vector<1x256xf32> to vector<4x256xf32>
    %9 = arith.mulf %5, %8 : vector<4x256xf32>
    %c0_8 = arith.constant 0 : index
    %c0_9 = arith.constant 0 : index
    %c0_10 = arith.constant 0 : index
    %10 = vector.load %arg3[%c0_8, %c0_9, %c0_10] : memref<9x4x4xf32, #tpu.memory_space<vmem>>, vector<1x4x4xf32>
    %11 = vector.shape_cast %10 : vector<1x4x4xf32> to vector<4x4xf32>
    %cst = arith.constant dense<0.000000e+00> : vector<4x256xf32>
    %12 = tpu.matmul %11, %9, %cst {dimension_numbers = #tpu.dot_dimension_numbers<[1], [0], [0], [1], [0, 0, 1, 1], [], []>} : vector<4x4xf32>, vector<4x256xf32>, vector<4x256xf32> -> vector<4x256xf32>
    %c16_i32 = arith.constant 16 : i32
    %13 = tpu.dynamic_rotate %4 by %c16_i32 dim 1 : vector<4x256xf32>, i32 -> vector<4x256xf32>
    %c1 = arith.constant 1 : index
    %c0_11 = arith.constant 0 : index
    %c0_12 = arith.constant 0 : index
    %14 = vector.load %arg5[%c1, %c0_11, %c0_12] : memref<9x1x256xf32, #tpu.memory_space<vmem>>, vector<1x1x256xf32>
    %15 = vector.shape_cast %14 : vector<1x1x256xf32> to vector<1x256xf32>
    %16 = vector.broadcast %15 : vector<1x256xf32> to vector<4x256xf32>
    %17 = arith.mulf %13, %16 : vector<4x256xf32>
    %c1_13 = arith.constant 1 : index
    %c0_14 = arith.constant 0 : index
    %c0_15 = arith.constant 0 : index
    %18 = vector.load %arg3[%c1_13, %c0_14, %c0_15] : memref<9x4x4xf32, #tpu.memory_space<vmem>>, vector<1x4x4xf32>
    %19 = vector.shape_cast %18 : vector<1x4x4xf32> to vector<4x4xf32>
    %cst_16 = arith.constant dense<0.000000e+00> : vector<4x256xf32>
    %20 = tpu.matmul %19, %17, %cst_16 {dimension_numbers = #tpu.dot_dimension_numbers<[1], [0], [0], [1], [0, 0, 1, 1], [], []>} : vector<4x4xf32>, vector<4x256xf32>, vector<4x256xf32> -> vector<4x256xf32>
    %21 = arith.addf %12, %20 : vector<4x256xf32>
    %c15_i32 = arith.constant 15 : i32
    %22 = tpu.dynamic_rotate %4 by %c15_i32 dim 1 : vector<4x256xf32>, i32 -> vector<4x256xf32>
    %c2 = arith.constant 2 : index
    %c0_17 = arith.constant 0 : index
    %c0_18 = arith.constant 0 : index
    %23 = vector.load %arg5[%c2, %c0_17, %c0_18] : memref<9x1x256xf32, #tpu.memory_space<vmem>>, vector<1x1x256xf32>
    %24 = vector.shape_cast %23 : vector<1x1x256xf32> to vector<1x256xf32>
    %25 = vector.broadcast %24 : vector<1x256xf32> to vector<4x256xf32>
    %26 = arith.mulf %22, %25 : vector<4x256xf32>
    %c2_19 = arith.constant 2 : index
    %c0_20 = arith.constant 0 : index
    %c0_21 = arith.constant 0 : index
    %27 = vector.load %arg3[%c2_19, %c0_20, %c0_21] : memref<9x4x4xf32, #tpu.memory_space<vmem>>, vector<1x4x4xf32>
    %28 = vector.shape_cast %27 : vector<1x4x4xf32> to vector<4x4xf32>
    %cst_22 = arith.constant dense<0.000000e+00> : vector<4x256xf32>
    %29 = tpu.matmul %28, %26, %cst_22 {dimension_numbers = #tpu.dot_dimension_numbers<[1], [0], [0], [1], [0, 0, 1, 1], [], []>} : vector<4x4xf32>, vector<4x256xf32>, vector<4x256xf32> -> vector<4x256xf32>
    %30 = arith.addf %21, %29 : vector<4x256xf32>
    %c1_i32 = arith.constant 1 : i32
    %31 = tpu.dynamic_rotate %4 by %c1_i32 dim 1 : vector<4x256xf32>, i32 -> vector<4x256xf32>
    %c3 = arith.constant 3 : index
    %c0_23 = arith.constant 0 : index
    %c0_24 = arith.constant 0 : index
    %32 = vector.load %arg5[%c3, %c0_23, %c0_24] : memref<9x1x256xf32, #tpu.memory_space<vmem>>, vector<1x1x256xf32>
    %33 = vector.shape_cast %32 : vector<1x1x256xf32> to vector<1x256xf32>
    %34 = vector.broadcast %33 : vector<1x256xf32> to vector<4x256xf32>
    %35 = arith.mulf %31, %34 : vector<4x256xf32>
    %c3_25 = arith.constant 3 : index
    %c0_26 = arith.constant 0 : index
    %c0_27 = arith.constant 0 : index
    %36 = vector.load %arg3[%c3_25, %c0_26, %c0_27] : memref<9x4x4xf32, #tpu.memory_space<vmem>>, vector<1x4x4xf32>
    %37 = vector.shape_cast %36 : vector<1x4x4xf32> to vector<4x4xf32>
    %cst_28 = arith.constant dense<0.000000e+00> : vector<4x256xf32>
    %38 = tpu.matmul %37, %35, %cst_28 {dimension_numbers = #tpu.dot_dimension_numbers<[1], [0], [0], [1], [0, 0, 1, 1], [], []>} : vector<4x4xf32>, vector<4x256xf32>, vector<4x256xf32> -> vector<4x256xf32>
    %c4 = arith.constant 4 : index
    %c0_29 = arith.constant 0 : index
    %c0_30 = arith.constant 0 : index
    %39 = vector.load %arg5[%c4, %c0_29, %c0_30] : memref<9x1x256xf32, #tpu.memory_space<vmem>>, vector<1x1x256xf32>
    %40 = vector.shape_cast %39 : vector<1x1x256xf32> to vector<1x256xf32>
    %41 = vector.broadcast %40 : vector<1x256xf32> to vector<4x256xf32>
    %42 = arith.mulf %4, %41 : vector<4x256xf32>
    %c4_31 = arith.constant 4 : index
    %c0_32 = arith.constant 0 : index
    %c0_33 = arith.constant 0 : index
    %43 = vector.load %arg3[%c4_31, %c0_32, %c0_33] : memref<9x4x4xf32, #tpu.memory_space<vmem>>, vector<1x4x4xf32>
    %44 = vector.shape_cast %43 : vector<1x4x4xf32> to vector<4x4xf32>
    %cst_34 = arith.constant dense<0.000000e+00> : vector<4x256xf32>
    %45 = tpu.matmul %44, %42, %cst_34 {dimension_numbers = #tpu.dot_dimension_numbers<[1], [0], [0], [1], [0, 0, 1, 1], [], []>} : vector<4x4xf32>, vector<4x256xf32>, vector<4x256xf32> -> vector<4x256xf32>
    %46 = arith.addf %38, %45 : vector<4x256xf32>
    %c255_i32 = arith.constant 255 : i32
    %47 = tpu.dynamic_rotate %4 by %c255_i32 dim 1 : vector<4x256xf32>, i32 -> vector<4x256xf32>
    %c5 = arith.constant 5 : index
    %c0_35 = arith.constant 0 : index
    %c0_36 = arith.constant 0 : index
    %48 = vector.load %arg5[%c5, %c0_35, %c0_36] : memref<9x1x256xf32, #tpu.memory_space<vmem>>, vector<1x1x256xf32>
    %49 = vector.shape_cast %48 : vector<1x1x256xf32> to vector<1x256xf32>
    %50 = vector.broadcast %49 : vector<1x256xf32> to vector<4x256xf32>
    %51 = arith.mulf %47, %50 : vector<4x256xf32>
    %c5_37 = arith.constant 5 : index
    %c0_38 = arith.constant 0 : index
    %c0_39 = arith.constant 0 : index
    %52 = vector.load %arg3[%c5_37, %c0_38, %c0_39] : memref<9x4x4xf32, #tpu.memory_space<vmem>>, vector<1x4x4xf32>
    %53 = vector.shape_cast %52 : vector<1x4x4xf32> to vector<4x4xf32>
    %cst_40 = arith.constant dense<0.000000e+00> : vector<4x256xf32>
    %54 = tpu.matmul %53, %51, %cst_40 {dimension_numbers = #tpu.dot_dimension_numbers<[1], [0], [0], [1], [0, 0, 1, 1], [], []>} : vector<4x4xf32>, vector<4x256xf32>, vector<4x256xf32> -> vector<4x256xf32>
    %55 = arith.addf %46, %54 : vector<4x256xf32>
    %c241_i32 = arith.constant 241 : i32
    %56 = tpu.dynamic_rotate %4 by %c241_i32 dim 1 : vector<4x256xf32>, i32 -> vector<4x256xf32>
    %c6 = arith.constant 6 : index
    %c0_41 = arith.constant 0 : index
    %c0_42 = arith.constant 0 : index
    %57 = vector.load %arg5[%c6, %c0_41, %c0_42] : memref<9x1x256xf32, #tpu.memory_space<vmem>>, vector<1x1x256xf32>
    %58 = vector.shape_cast %57 : vector<1x1x256xf32> to vector<1x256xf32>
    %59 = vector.broadcast %58 : vector<1x256xf32> to vector<4x256xf32>
    %60 = arith.mulf %56, %59 : vector<4x256xf32>
    %c6_43 = arith.constant 6 : index
    %c0_44 = arith.constant 0 : index
    %c0_45 = arith.constant 0 : index
    %61 = vector.load %arg3[%c6_43, %c0_44, %c0_45] : memref<9x4x4xf32, #tpu.memory_space<vmem>>, vector<1x4x4xf32>
    %62 = vector.shape_cast %61 : vector<1x4x4xf32> to vector<4x4xf32>
    %cst_46 = arith.constant dense<0.000000e+00> : vector<4x256xf32>
    %63 = tpu.matmul %62, %60, %cst_46 {dimension_numbers = #tpu.dot_dimension_numbers<[1], [0], [0], [1], [0, 0, 1, 1], [], []>} : vector<4x4xf32>, vector<4x256xf32>, vector<4x256xf32> -> vector<4x256xf32>
    %c240_i32 = arith.constant 240 : i32
    %64 = tpu.dynamic_rotate %4 by %c240_i32 dim 1 : vector<4x256xf32>, i32 -> vector<4x256xf32>
    %c7 = arith.constant 7 : index
    %c0_47 = arith.constant 0 : index
    %c0_48 = arith.constant 0 : index
    %65 = vector.load %arg5[%c7, %c0_47, %c0_48] : memref<9x1x256xf32, #tpu.memory_space<vmem>>, vector<1x1x256xf32>
    %66 = vector.shape_cast %65 : vector<1x1x256xf32> to vector<1x256xf32>
    %67 = vector.broadcast %66 : vector<1x256xf32> to vector<4x256xf32>
    %68 = arith.mulf %64, %67 : vector<4x256xf32>
    %c7_49 = arith.constant 7 : index
    %c0_50 = arith.constant 0 : index
    %c0_51 = arith.constant 0 : index
    %69 = vector.load %arg3[%c7_49, %c0_50, %c0_51] : memref<9x4x4xf32, #tpu.memory_space<vmem>>, vector<1x4x4xf32>
    %70 = vector.shape_cast %69 : vector<1x4x4xf32> to vector<4x4xf32>
    %cst_52 = arith.constant dense<0.000000e+00> : vector<4x256xf32>
    %71 = tpu.matmul %70, %68, %cst_52 {dimension_numbers = #tpu.dot_dimension_numbers<[1], [0], [0], [1], [0, 0, 1, 1], [], []>} : vector<4x4xf32>, vector<4x256xf32>, vector<4x256xf32> -> vector<4x256xf32>
    %72 = arith.addf %63, %71 : vector<4x256xf32>
    %c239_i32 = arith.constant 239 : i32
    %73 = tpu.dynamic_rotate %4 by %c239_i32 dim 1 : vector<4x256xf32>, i32 -> vector<4x256xf32>
    %c8 = arith.constant 8 : index
    %c0_53 = arith.constant 0 : index
    %c0_54 = arith.constant 0 : index
    %74 = vector.load %arg5[%c8, %c0_53, %c0_54] : memref<9x1x256xf32, #tpu.memory_space<vmem>>, vector<1x1x256xf32>
    %75 = vector.shape_cast %74 : vector<1x1x256xf32> to vector<1x256xf32>
    %76 = vector.broadcast %75 : vector<1x256xf32> to vector<4x256xf32>
    %77 = arith.mulf %73, %76 : vector<4x256xf32>
    %c8_55 = arith.constant 8 : index
    %c0_56 = arith.constant 0 : index
    %c0_57 = arith.constant 0 : index
    %78 = vector.load %arg3[%c8_55, %c0_56, %c0_57] : memref<9x4x4xf32, #tpu.memory_space<vmem>>, vector<1x4x4xf32>
    %79 = vector.shape_cast %78 : vector<1x4x4xf32> to vector<4x4xf32>
    %cst_58 = arith.constant dense<0.000000e+00> : vector<4x256xf32>
    %80 = tpu.matmul %79, %77, %cst_58 {dimension_numbers = #tpu.dot_dimension_numbers<[1], [0], [0], [1], [0, 0, 1, 1], [], []>} : vector<4x4xf32>, vector<4x256xf32>, vector<4x256xf32> -> vector<4x256xf32>
    %81 = arith.addf %72, %80 : vector<4x256xf32>
    %82 = arith.addf %30, %55 : vector<4x256xf32>
    %83 = arith.addf %82, %81 : vector<4x256xf32>
    %c0_59 = arith.constant 0 : index
    %c0_60 = arith.constant 0 : index
    %84 = vector.load %arg4[%c0_59, %c0_60] : memref<4x1xf32, #tpu.memory_space<vmem>>, vector<4x1xf32>
    %85 = vector.broadcast %84 : vector<4x1xf32> to vector<4x256xf32>
    %86 = arith.addf %83, %85 : vector<4x256xf32>
    %c0_61 = arith.constant 0 : index
    %c0_62 = arith.constant 0 : index
    %c0_63 = arith.constant 0 : index
    %87 = vector.load %arg6[%c0_61, %c0_62, %c0_63] : memref<1x4x256xf32, #tpu.memory_space<vmem>>, vector<1x4x256xf32>
    %88 = vector.shape_cast %87 : vector<1x4x256xf32> to vector<4x256xf32>
    %89 = vector.shape_cast %86 : vector<4x256xf32> to vector<1x4x256xf32>
    tpu.vector_store %arg6[%c0_61, %c0_62, %c0_63], %89 {strides = array<i32>} : memref<1x4x256xf32, #tpu.memory_space<vmem>>, vector<1x4x256xf32>,
    return
  }
  func.func @transform_0(%arg0: i32) -> (i32, i32, i32) {
    %c0_i32 = arith.constant 0 : i32
    %c0_i32_0 = arith.constant 0 : i32
    %c0_i32_1 = arith.constant 0 : i32
    return %arg0, %c0_i32, %c0_i32_0 : i32, i32, i32
  }
  func.func @transform_1(%arg0: i32) -> (i32, i32, i32) {
    %c0_i32 = arith.constant 0 : i32
    %c0_i32_0 = arith.constant 0 : i32
    %c0_i32_1 = arith.constant 0 : i32
    return %arg0, %c0_i32, %c0_i32_0 : i32, i32, i32
  }
  func.func @transform_2(%arg0: i32) -> (i32, i32, i32) {
    %c0_i32 = arith.constant 0 : i32
    %c0_i32_0 = arith.constant 0 : i32
    %c0_i32_1 = arith.constant 0 : i32
    %c0_i32_2 = arith.constant 0 : i32
    return %c0_i32, %c0_i32_0, %c0_i32_1 : i32, i32, i32
  }
  func.func @transform_3(%arg0: i32) -> (i32, i32) {
    %c0_i32 = arith.constant 0 : i32
    %c0_i32_0 = arith.constant 0 : i32
    %c0_i32_1 = arith.constant 0 : i32
    return %c0_i32, %c0_i32_0 : i32, i32
  }
  func.func @transform_4(%arg0: i32) -> (i32, i32, i32) {
    %c0_i32 = arith.constant 0 : i32
    %c0_i32_0 = arith.constant 0 : i32
    %c0_i32_1 = arith.constant 0 : i32
    %c0_i32_2 = arith.constant 0 : i32
    return %c0_i32, %c0_i32_0, %c0_i32_1 : i32, i32, i32
  }
  func.func @transform_5(%arg0: i32) -> (i32, i32, i32) {
    %c0_i32 = arith.constant 0 : i32
    %c0_i32_0 = arith.constant 0 : i32
    %c0_i32_1 = arith.constant 0 : i32
    return %arg0, %c0_i32, %c0_i32_0 : i32, i32, i32
  }
}

</mosaic_0001>

<llo_original>
// kernel: tpu_custom_call.1
$region0: #{tpu_custom_call.1}
  #allocation0 [shape = 'u32[]', space=smem, size = 0x4, offset = 0x4, fixed_abs, tag = 'smem constant byte address 0x4 - core index']
  #allocation1 [shape = 'u32[144,128]{1,0:T(1,128)}', space=vmem, size = 0x12000, scoped, tag = 'internal scratch']
  %s0 = inlined_call_operand.vmem [shape: f32[2,4,256], index: 0, kind: input, shape index: {}]
  %s1 = inlined_call_operand.vmem [shape: f32[2,4,256], index: 1, kind: input, shape index: {}]
  %s2 = inlined_call_operand.vmem [shape: f32[9,4,4], index: 2, kind: input, shape index: {}]
  %s3 = inlined_call_operand.vmem [shape: f32[4,1], index: 3, kind: input, shape index: {}]
  %s4 = inlined_call_operand.vmem [shape: f32[9,1,256], index: 4, kind: input, shape index: {}]
  %s5 = inlined_call_operand.hbm [shape: f32[2,4,256], index: 5, kind: output, shape index: {}]
  %s6 = sld [smem:[#allocation0]]
  $region53: #{tpu_custom_call.1} parent=0
    _
  %s8 = ssub.s32 1, %s6
  %s9 = scalar_select 0, %s8, %s6
  $region1: #{tpu_custom_call.1} parent=0
    #allocation2 [shape = 'u8[8192]{0}', space=vmem, size = 0x2000, scoped, tag = 'output window, operand 0']
    #allocation3 [shape = 's32[2]{0}', space=sflag, size = 0x8, scoped, tag = 'scoped memory for tpu_custom_call.1']
    %10 = vsyncpa [#allocation3], 0
    %s11 = scalar_lea.sflag [#allocation3], 1
    %12 = vsyncpa %s11, 0
    loop: start=0, step=1, limit=4
    $region2: #{tpu_custom_call.1} parent=1 // loop_pre_header
      _
    $region3: #{tpu_custom_call.1} parent=1 // loop_header
      %s14 = sphi 0, %s18
      %p15 = scmp.ge.s32.totalorder %s14, 4
      %s24 = sphi 0, %s26
      %s27 = sphi 0, %s24
      %s28 = sphi 0, %s27
      %s44 = sphi 0, %s28
      %s50 = sphi 0, %s52
      %s53 = sphi 0, %s50
      %s54 = sphi 0, %s53
      %s70 = sphi 0, %s54
      %s74 = sphi 0, %s74
      %s76 = sphi 0, %s74
      %s77 = sphi 0, %s76
      %s91 = sphi 0, %s77
      %s95 = sphi 0, %s95
      %s97 = sphi 0, %s95
      %s98 = sphi 0, %s97
      %s112 = sphi 0, %s98
      %s116 = sphi 0, %s116
      %s118 = sphi 0, %s116
      %s119 = sphi 0, %s118
      %s133 = sphi 0, %s119
      %s139 = sphi 0, %s141
      %s142 = sphi 0, %s139
      %s143 = sphi 0, %s142
      %s159 = sphi 0, %s143
    $region4: #{tpu_custom_call.1} parent=1 // loop_header_branch
      %17 = sbr.rel (%p15) target = $region8
    $region5: #{tpu_custom_call.1} parent=1 // loop_body
      %s19 = ssub.s32 %s14, 1
      %s20 = ssub.s32 %s14, 2
      %s21 = sadd.s32 %s14, 1
      %s22 = ssub.s32 %s14, %s21
      %p23 = scmp.eq.s32.totalorder %s22, 0
      %s25 = sadd.s32 %s24, 1
      %s26 = scalar_select %p23, %s24, %s25
      %p29 = pneg %p23
      %p30 = scmp.eq.s32.totalorder %s14, 1
      %p31 = por %p29, %p30
      %p32 = scmp.ne.s32.totalorder %s24, %s27
      %p33 = scmp.eq.s32.totalorder %s14, 0
      %p34 = por %p32, %p33
      %p35 = scmp.ne.s32.totalorder %s24, %s27
      %p36 = scmp.eq.s32.totalorder %s19, 1
      %p37 = por %p35, %p36
      %p38 = scmp.ne.s32.totalorder %s27, %s28
      %p39 = scmp.eq.s32.totalorder %s19, 0
      %p40 = por %p38, %p39
      %p41 = scmp.ne.s32.totalorder %s27, %s28
      %p42 = scmp.eq.s32.totalorder %s20, 1
      %p43 = por %p41, %p42
      %p45 = scmp.ne.s32.totalorder %s28, %s44
      %p46 = scmp.eq.s32.totalorder %s20, 0
      %p47 = por %p45, %p46
      %s48 = ssub.s32 %s14, %s21
      %p49 = scmp.eq.s32.totalorder %s48, 0
      %s51 = sadd.s32 %s50, 1
      %s52 = scalar_select %p49, %s50, %s51
      %p55 = pneg %p49
      %p56 = scmp.eq.s32.totalorder %s14, 1
      %p57 = por %p55, %p56
      %p58 = scmp.ne.s32.totalorder %s50, %s53
      %p59 = scmp.eq.s32.totalorder %s14, 0
      %p60 = por %p58, %p59
      %p61 = scmp.ne.s32.totalorder %s50, %s53
      %p62 = scmp.eq.s32.totalorder %s19, 1
      %p63 = por %p61, %p62
      %p64 = scmp.ne.s32.totalorder %s53, %s54
      %p65 = scmp.eq.s32.totalorder %s19, 0
      %p66 = por %p64, %p65
      %p67 = scmp.ne.s32.totalorder %s53, %s54
      %p68 = scmp.eq.s32.totalorder %s20, 1
      %p69 = por %p67, %p68
      %p71 = scmp.ne.s32.totalorder %s54, %s70
      %p72 = scmp.eq.s32.totalorder %s20, 0
      %p73 = por %p71, %p72
      %s75 = sadd.s32 %s74, 1
      %p78 = scmp.eq.s32.totalorder %s14, 1
      %p79 = scmp.ne.s32.totalorder %s74, %s76
      %p80 = scmp.eq.s32.totalorder %s14, 0
      %p81 = por %p79, %p80
      %p82 = scmp.ne.s32.totalorder %s74, %s76
      %p83 = scmp.eq.s32.totalorder %s19, 1
      %p84 = por %p82, %p83
      %p85 = scmp.ne.s32.totalorder %s76, %s77
      %p86 = scmp.eq.s32.totalorder %s19, 0
      %p87 = por %p85, %p86
      %p88 = scmp.ne.s32.totalorder %s76, %s77
      %p89 = scmp.eq.s32.totalorder %s20, 1
      %p90 = por %p88, %p89
      %p92 = scmp.ne.s32.totalorder %s77, %s91
      %p93 = scmp.eq.s32.totalorder %s20, 0
      %p94 = por %p92, %p93
      %s96 = sadd.s32 %s95, 1
      %p99 = scmp.eq.s32.totalorder %s14, 1
      %p100 = scmp.ne.s32.totalorder %s95, %s97
      %p101 = scmp.eq.s32.totalorder %s14, 0
      %p102 = por %p100, %p101
      %p103 = scmp.ne.s32.totalorder %s95, %s97
      %p104 = scmp.eq.s32.totalorder %s19, 1
      %p105 = por %p103, %p104
      %p106 = scmp.ne.s32.totalorder %s97, %s98
      %p107 = scmp.eq.s32.totalorder %s19, 0
      %p108 = por %p106, %p107
      %p109 = scmp.ne.s32.totalorder %s97, %s98
      %p110 = scmp.eq.s32.totalorder %s20, 1
      %p111 = por %p109, %p110
      %p113 = scmp.ne.s32.totalorder %s98, %s112
      %p114 = scmp.eq.s32.totalorder %s20, 0
      %p115 = por %p113, %p114
      %s117 = sadd.s32 %s116, 1
      %p120 = scmp.eq.s32.totalorder %s14, 1
      %p121 = scmp.ne.s32.totalorder %s116, %s118
      %p122 = scmp.eq.s32.totalorder %s14, 0
      %p123 = por %p121, %p122
      %p124 = scmp.ne.s32.totalorder %s116, %s118
      %p125 = scmp.eq.s32.totalorder %s19, 1
      %p126 = por %p124, %p125
      %p127 = scmp.ne.s32.totalorder %s118, %s119
      %p128 = scmp.eq.s32.totalorder %s19, 0
      %p129 = por %p127, %p128
      %p130 = scmp.ne.s32.totalorder %s118, %s119
      %p131 = scmp.eq.s32.totalorder %s20, 1
      %p132 = por %p130, %p131
      %p134 = scmp.ne.s32.totalorder %s119, %s133
      %p135 = scmp.eq.s32.totalorder %s20, 0
      %p136 = por %p134, %p135
      %s137 = ssub.s32 %s14, %s21
      %p138 = scmp.eq.s32.totalorder %s137, 0
      %s140 = sadd.s32 %s139, 1
      %s141 = scalar_select %p138, %s139, %s140
      %p144 = pneg %p138
      %p145 = scmp.eq.s32.totalorder %s14, 1
      %p146 = por %p144, %p145
      %p147 = scmp.ne.s32.totalorder %s139, %s142
      %p148 = scmp.eq.s32.totalorder %s14, 0
      %p149 = por %p147, %p148
      %p150 = scmp.ne.s32.totalorder %s139, %s142
      %p151 = scmp.eq.s32.totalorder %s19, 1
      %p152 = por %p150, %p151
      %p153 = scmp.ne.s32.totalorder %s142, %s143
      %p154 = scmp.eq.s32.totalorder %s19, 0
      %p155 = por %p153, %p154
      %p156 = scmp.ne.s32.totalorder %s142, %s143
      %p157 = scmp.eq.s32.totalorder %s20, 1
      %p158 = por %p156, %p157
      %p160 = scmp.ne.s32.totalorder %s143, %s159
      %p161 = scmp.eq.s32.totalorder %s20, 0
      %p162 = por %p160, %p161
      %p163 = scmp.le.s32.totalorder 1, %s14
      %p164 = scmp.lt.s32.totalorder %s14, 3
      %p165 = pnand %p163, %p164
      %p166 = pneg %p165
      // Predicated region
      $region9: #{tpu_custom_call.1} parent=5 // pred_check
        _
      $region10: #{tpu_custom_call.1} parent=5 // pred_check_branch
        %168 = sbr.rel (%p165) target = $region12
      $region11: #{tpu_custom_call.1} parent=5 // pred_region
        %s169 = ssub.s32 %s14, 1
        // Predicated region
        $region13: #{tpu_custom_call.1} parent=11 // pred_check
          %p170 = pneg %p87
        $region14: #{tpu_custom_call.1} parent=11 // pred_check_branch
          %172 = sbr.rel (%p170) target = $region16
        $region15: #{tpu_custom_call.1} parent=11 // pred_region
          _
        $region16: #{tpu_custom_call.1} parent=11 // pred_fallthru
          _
        // Predicated region
        $region17: #{tpu_custom_call.1} parent=11 // pred_check
          %p173 = pneg %p108
        $region18: #{tpu_custom_call.1} parent=11 // pred_check_branch
          %175 = sbr.rel (%p173) target = $region20
        $region19: #{tpu_custom_call.1} parent=11 // pred_region
          _
        $region20: #{tpu_custom_call.1} parent=11 // pred_fallthru
          _
        // Predicated region
        $region21: #{tpu_custom_call.1} parent=11 // pred_check
          %p176 = pneg %p129
        $region22: #{tpu_custom_call.1} parent=11 // pred_check_branch
          %178 = sbr.rel (%p176) target = $region24
        $region23: #{tpu_custom_call.1} parent=11 // pred_region
          _
        $region24: #{tpu_custom_call.1} parent=11 // pred_fallthru
          _
      $region12: #{tpu_custom_call.1} parent=5 // pred_fallthru
        _
      %p179 = scmp.lt.s32.totalorder %s14, 2
      // Predicated region
      $region25: #{tpu_custom_call.1} parent=5 // pred_check
        %p180 = pneg %p179
      $region26: #{tpu_custom_call.1} parent=5 // pred_check_branch
        %182 = sbr.rel (%p180) target = $region28
      $region27: #{tpu_custom_call.1} parent=5 // pred_region
        // Predicated region
        $region29: #{tpu_custom_call.1} parent=27 // pred_check
          %p183 = pneg %p34
        $region30: #{tpu_custom_call.1} parent=27 // pred_check_branch
          %185 = sbr.rel (%p183) target = $region32
        $region31: #{tpu_custom_call.1} parent=27 // pred_region
          %p186 = scmp.lt.s32.totalorder %s14, 1
          %s187 = scalar_select %p186, %s14, 1
          %s188 = smul.addr %s187, 2
          %s189 = smul.addr %s188, 4
          %s190 = scalar_lea.vmem %s0, %s189
        $region32: #{tpu_custom_call.1} parent=27 // pred_fallthru
          _
        // Predicated region
        $region33: #{tpu_custom_call.1} parent=27 // pred_check
          %p191 = pneg %p60
        $region34: #{tpu_custom_call.1} parent=27 // pred_check_branch
          %193 = sbr.rel (%p191) target = $region36
        $region35: #{tpu_custom_call.1} parent=27 // pred_region
          %p194 = scmp.lt.s32.totalorder %s14, 1
          %s195 = scalar_select %p194, %s14, 1
          %s196 = smul.addr %s195, 2
          %s197 = smul.addr %s196, 4
          %s198 = scalar_lea.vmem %s1, %s197
        $region36: #{tpu_custom_call.1} parent=27 // pred_fallthru
          _
      $region28: #{tpu_custom_call.1} parent=5 // pred_fallthru
        _
      %p199 = scmp.le.s32.totalorder 1, %s14
      %p200 = scmp.lt.s32.totalorder %s14, 3
      %p201 = pnand %p199, %p200
      %p202 = pneg %p201
      // Predicated region
      $region37: #{tpu_custom_call.1} parent=5 // pred_check
        _
      $region38: #{tpu_custom_call.1} parent=5 // pred_check_branch
        %204 = sbr.rel (%p201) target = $region40
      $region39: #{tpu_custom_call.1} parent=5 // pred_region
        %s205 = ssub.s32 %s14, 1
        %p206 = scmp.lt.s32.totalorder %s19, 1
        %s207 = scalar_select %p206, %s19, 1
        %s208 = smul.addr %s207, 2
        %s209 = smul.addr %s208, 4
        %s210 = scalar_lea.vmem %s0, %s209
        %p211 = pneg %p40
        %p212 = pneg %p37
        %p213 = scmp.lt.s32.totalorder %s19, 1
        %s214 = scalar_select %p213, %s19, 1
        %s215 = smul.addr %s214, 2
        %s216 = smul.addr %s215, 4
        %s217 = scalar_lea.vmem %s1, %s216
        %p218 = pneg %p66
        %p219 = pneg %p63
        %p220 = pneg %p87
        %p221 = pneg %p84
        %p222 = pneg %p108
        %p223 = pneg %p105
        %p224 = pneg %p129
        %p225 = pneg %p126
        %p226 = pneg %p155
        %p227 = pneg %p152
        %s228 = sand.u32 %s142, 1
        %s229 = scalar_lea.sflag [#allocation3], %s228
        %s230 = sand.u32 %s142, 1
        %s231 = smul.addr %s230, 8
        %s232 = scalar_lea.vmem [#allocation2], %s231
        %p233 = scmp.lt.s32.totalorder %s19, 1
        %s234 = scalar_select %p233, %s19, 1
        %s235 = smul.addr %s234, 2
        %s236 = smul.addr %s235, 4
        %s237 = scalar_lea.vmem %s0, %s236
        %p238 = scmp.lt.s32.totalorder %s19, 1
        %s239 = scalar_select %p238, %s19, 1
        %s240 = smul.addr %s239, 2
        %s241 = smul.addr %s240, 4
        %s242 = scalar_lea.vmem %s1, %s241
        %v243 = vld [vmem:[%s237] sm:$0xff]
        %v244 = vld [vmem:[%s242] sm:$0xff]
        %v245 = vmul.f32 %v243, %v244
        %v247 = vcombine.high %v245, %v245
        %249 = vrot.lane.b32.xlu0 %v245, 17
        %v250 = vpop.permute.xlu0 %249
        %251 = vrot.lane.b32.xlu0 %v247, 17
        %v252 = vpop.permute.xlu0 %251
        %v253 = vlaneseq
        %v254 = vand.u32 %v253, 127
        %vm255 = vcmp.lt.s32.totalorder %v254, 17
        %v256 = vsel %vm255, %v250, %v252
        %v257 = vsel %vm255, %v252, %v250
        %v258 = vld [vmem:[%s4] sm:$0x3]
        %v260 = vlaneseq
        %v261 = vshrl.u32 %v260, 7
        %v262 = vsub.s32 0, %v261
        %v263 = vrot.slane %v258, %v262
        %v264 = vlaneseq
        %v265 = vshrl.u32 %v264, 7
        %v266 = vsub.s32 1, %v265
        %v267 = vrot.slane %v258, %v266
        %v270 = vmul.f32 %v257, %v263
        %v271 = vmul.f32 %v256, %v267
        %v272 = vld [vmem:[%s2] sm:$0xf]
        %273 = vrot.lane.b32.xlu0 %v245, 16
        %v274 = vpop.permute.xlu0 %273
        %275 = vrot.lane.b32.xlu0 %v247, 16
        %v276 = vpop.permute.xlu0 %275
        %vm277 = vcmp.lt.s32.totalorder %v254, 16
        %v278 = vsel %vm277, %v274, %v276
        %v279 = vsel %vm277, %v276, %v274
        %s280 = scalar_lea.vmem %s4, 2
        %v281 = vld [vmem:[%s280] sm:$0x3]
        %v283 = vlaneseq
        %v284 = vshrl.u32 %v283, 7
        %v285 = vsub.s32 0, %v284
        %v286 = vrot.slane %v281, %v285
        %v287 = vlaneseq
        %v288 = vshrl.u32 %v287, 7
        %v289 = vsub.s32 1, %v288
        %v290 = vrot.slane %v281, %v289
        %v293 = vmul.f32 %v279, %v286
        %v294 = vmul.f32 %v278, %v290
        %s295 = scalar_lea.vmem %s2, 4
        %v296 = vld [vmem:[%s295] sm:$0xf]
        %vm297 = vcmask 31744
        %v299 = vsel %vm297, %v296, 0
        %vm301 = vcmask 1043456
        %v303 = vsel %vm301, %v293, 0
        %v306 = vsel %vm301, %v294, 0
        %308 = vmatprep.subr.mxu0 %v306
        %309 = vmatpush1.msra.mxu0 %v303
        %310 = vmatprep.subr.mxu0 0.0
        %311 = vmatpush1.msra.mxu0 0.0
        %312 = vmatprep.subr.mxu0 0.0
        %313 = vmatpush1.msra.mxu0 0.0
        %314 = vmatprep.subr.mxu0 0.0
        %315 = vmatpush1.msra.mxu0 0.0
        %316 = vmatprep.subr.mxu0 0.0
        %317 = vmatpush1.msra.mxu0 0.0
        %318 = vmatprep.subr.mxu0 0.0
        %319 = vmatpush1.msra.mxu0 0.0
        %320 = vmatprep.subr.mxu0 0.0
        %321 = vmatpush1.msra.mxu0 0.0
        %322 = vmatprep.subr.mxu0 0.0
        %323 = vmatpush1.msra.mxu0 0.0
        %324 = vmatprep.subr.mxu0 0.0
        %325 = vmatpush1.msra.mxu0 0.0
        %326 = vmatprep.subr.mxu0 0.0
        %327 = vmatpush1.msra.mxu0 0.0
        %328 = vmatprep.subr.mxu0 0.0
        %329 = vmatpush1.msra.mxu0 0.0
        %330 = vmatprep.subr.mxu0 0.0
        %331 = vmatpush1.msra.mxu0 0.0
        %332 = vmatprep.subr.mxu0 0.0
        %333 = vmatpush1.msra.mxu0 0.0
        %334 = vmatprep.subr.mxu0 0.0
        %335 = vmatpush1.msra.mxu0 0.0
        %336 = vmatprep.subr.mxu0 0.0
        %337 = vmatpush1.msra.mxu0 0.0
        %338 = vmatprep.subr.mxu0 0.0
        %339 = vmatpush1.msra.mxu0 0.0
        %340 = vmatprep.subr.mxu0 0.0
        %341 = vmatpush1.msra.mxu0 0.0
        %342 = vmatprep.subr.mxu0 0.0
        %343 = vmatpush1.msra.mxu0 0.0
        %344 = vmatprep.subr.mxu0 0.0
        %345 = vmatpush1.msra.mxu0 0.0
        %346 = vmatprep.subr.mxu0 0.0
        %347 = vmatpush1.msra.mxu0 0.0
        %348 = vmatprep.subr.mxu0 0.0
        %349 = vmatpush1.msra.mxu0 0.0
        %350 = vmatprep.subr.mxu0 0.0
        %351 = vmatpush1.msra.mxu0 0.0
        %352 = vmatprep.subr.mxu0 0.0
        %353 = vmatpush1.msra.mxu0 0.0
        %354 = vmatprep.subr.mxu0 0.0
        %355 = vmatpush1.msra.mxu0 0.0
        %356 = vmatprep.subr.mxu0 0.0
        %357 = vmatpush1.msra.mxu0 0.0
        %358 = vmatprep.subr.mxu0 0.0
        %359 = vmatpush1.msra.mxu0 0.0
        %360 = vmatprep.subr.mxu0 0.0
        %361 = vmatpush1.msra.mxu0 0.0
        %362 = vmatprep.subr.mxu0 0.0
        %363 = vmatpush1.msra.mxu0 0.0
        %364 = vmatprep.subr.mxu0 0.0
        %365 = vmatpush1.msra.mxu0 0.0
        %366 = vmatprep.subr.mxu0 0.0
        %367 = vmatpush1.msra.mxu0 0.0
        %368 = vmatprep.subr.mxu0 0.0
        %369 = vmatpush1.msra.mxu0 0.0
        %370 = vmatprep.subr.mxu0 0.0
        %371 = vmatpush1.msra.mxu0 0.0
        %372 = vmatprep.mubr.f32.mxu0 0.0
        %373 = vmatmul.mubr.f32.gmra.mrb[0].mxu0 %v299
        %v374 = vpop.f32.mrb[0].mxu0
        %v375 = vadd.f32 0.0, %v374
        %v376 = vpop.f32.mrb[0].mxu0
        %v377 = vadd.f32 0.0, %v376
        %378 = vdwg.mxu0
        %v380 = vsel %vm297, %v272, 0
        %v383 = vsel %vm301, %v270, 0
        %v386 = vsel %vm301, %v271, 0
        %388 = vmatprep.subr.mxu0 %v386
        %389 = vmatpush1.msra.mxu0 %v383
        %390 = vmatprep.subr.mxu0 0.0
        %391 = vmatpush1.msra.mxu0 0.0
        %392 = vmatprep.subr.mxu0 0.0
        %393 = vmatpush1.msra.mxu0 0.0
        %394 = vmatprep.subr.mxu0 0.0
        %395 = vmatpush1.msra.mxu0 0.0
        %396 = vmatprep.subr.mxu0 0.0
        %397 = vmatpush1.msra.mxu0 0.0
        %398 = vmatprep.subr.mxu0 0.0
        %399 = vmatpush1.msra.mxu0 0.0
        %400 = vmatprep.subr.mxu0 0.0
        %401 = vmatpush1.msra.mxu0 0.0
        %402 = vmatprep.subr.mxu0 0.0
        %403 = vmatpush1.msra.mxu0 0.0
        %404 = vmatprep.subr.mxu0 0.0
        %405 = vmatpush1.msra.mxu0 0.0
        %406 = vmatprep.subr.mxu0 0.0
        %407 = vmatpush1.msra.mxu0 0.0
        %408 = vmatprep.subr.mxu0 0.0
        %409 = vmatpush1.msra.mxu0 0.0
        %410 = vmatprep.subr.mxu0 0.0
        %411 = vmatpush1.msra.mxu0 0.0
        %412 = vmatprep.subr.mxu0 0.0
        %413 = vmatpush1.msra.mxu0 0.0
        %414 = vmatprep.subr.mxu0 0.0
        %415 = vmatpush1.msra.mxu0 0.0
        %416 = vmatprep.subr.mxu0 0.0
        %417 = vmatpush1.msra.mxu0 0.0
        %418 = vmatprep.subr.mxu0 0.0
        %419 = vmatpush1.msra.mxu0 0.0
        %420 = vmatprep.subr.mxu0 0.0
        %421 = vmatpush1.msra.mxu0 0.0
        %422 = vmatprep.subr.mxu0 0.0
        %423 = vmatpush1.msra.mxu0 0.0
        %424 = vmatprep.subr.mxu0 0.0
        %425 = vmatpush1.msra.mxu0 0.0
        %426 = vmatprep.subr.mxu0 0.0
        %427 = vmatpush1.msra.mxu0 0.0
        %428 = vmatprep.subr.mxu0 0.0
        %429 = vmatpush1.msra.mxu0 0.0
        %430 = vmatprep.subr.mxu0 0.0
        %431 = vmatpush1.msra.mxu0 0.0
        %432 = vmatprep.subr.mxu0 0.0
        %433 = vmatpush1.msra.mxu0 0.0
        %434 = vmatprep.subr.mxu0 0.0
        %435 = vmatpush1.msra.mxu0 0.0
        %436 = vmatprep.subr.mxu0 0.0
        %437 = vmatpush1.msra.mxu0 0.0
        %438 = vmatprep.subr.mxu0 0.0
        %439 = vmatpush1.msra.mxu0 0.0
        %440 = vmatprep.subr.mxu0 0.0
        %441 = vmatpush1.msra.mxu0 0.0
        %442 = vmatprep.subr.mxu0 0.0
        %443 = vmatpush1.msra.mxu0 0.0
        %444 = vmatprep.subr.mxu0 0.0
        %445 = vmatpush1.msra.mxu0 0.0
        %446 = vmatprep.subr.mxu0 0.0
        %447 = vmatpush1.msra.mxu0 0.0
        %448 = vmatprep.subr.mxu0 0.0
        %449 = vmatpush1.msra.mxu0 0.0
        %450 = vmatprep.subr.mxu0 0.0
        %451 = vmatpush1.msra.mxu0 0.0
        %452 = vmatprep.mubr.f32.mxu0 0.0
        %453 = vmatmul.mubr.f32.gmra.mrb[0].mxu0 %v380
        %v454 = vpop.f32.mrb[0].mxu0
        %v455 = vadd.f32 %v375, %v454
        %v456 = vpop.f32.mrb[0].mxu0
        %v457 = vadd.f32 %v377, %v456
        %458 = vdwg.mxu0
        %459 = vrot.lane.b32.xlu0 %v245, 15
        %v460 = vpop.permute.xlu0 %459
        %461 = vrot.lane.b32.xlu0 %v247, 15
        %v462 = vpop.permute.xlu0 %461
        %vm463 = vcmp.lt.s32.totalorder %v254, 15
        %v464 = vsel %vm463, %v460, %v462
        %v465 = vsel %vm463, %v462, %v460
        %s466 = scalar_lea.vmem %s4, 4
        %v467 = vld [vmem:[%s466] sm:$0x3]
        %v469 = vlaneseq
        %v470 = vshrl.u32 %v469, 7
        %v471 = vsub.s32 0, %v470
        %v472 = vrot.slane %v467, %v471
        %v473 = vlaneseq
        %v474 = vshrl.u32 %v473, 7
        %v475 = vsub.s32 1, %v474
        %v476 = vrot.slane %v467, %v475
        %v479 = vmul.f32 %v465, %v472
        %v480 = vmul.f32 %v464, %v476
        %s481 = scalar_lea.vmem %s2, 8
        %v482 = vld [vmem:[%s481] sm:$0xf]
        %v484 = vsel %vm297, %v482, 0
        %v487 = vsel %vm301, %v479, 0
        %v490 = vsel %vm301, %v480, 0
        %492 = vmatprep.subr.mxu0 %v490
        %493 = vmatpush1.msra.mxu0 %v487
        %494 = vmatprep.subr.mxu0 0.0
        %495 = vmatpush1.msra.mxu0 0.0
        %496 = vmatprep.subr.mxu0 0.0
        %497 = vmatpush1.msra.mxu0 0.0
        %498 = vmatprep.subr.mxu0 0.0
        %499 = vmatpush1.msra.mxu0 0.0
        %500 = vmatprep.subr.mxu0 0.0
        %501 = vmatpush1.msra.mxu0 0.0
        %502 = vmatprep.subr.mxu0 0.0
        %503 = vmatpush1.msra.mxu0 0.0
        %504 = vmatprep.subr.mxu0 0.0
        %505 = vmatpush1.msra.mxu0 0.0
        %506 = vmatprep.subr.mxu0 0.0
        %507 = vmatpush1.msra.mxu0 0.0
        %508 = vmatprep.subr.mxu0 0.0
        %509 = vmatpush1.msra.mxu0 0.0
        %510 = vmatprep.subr.mxu0 0.0
        %511 = vmatpush1.msra.mxu0 0.0
        %512 = vmatprep.subr.mxu0 0.0
        %513 = vmatpush1.msra.mxu0 0.0
        %514 = vmatprep.subr.mxu0 0.0
        %515 = vmatpush1.msra.mxu0 0.0
        %516 = vmatprep.subr.mxu0 0.0
        %517 = vmatpush1.msra.mxu0 0.0
        %518 = vmatprep.subr.mxu0 0.0
        %519 = vmatpush1.msra.mxu0 0.0
        %520 = vmatprep.subr.mxu0 0.0
        %521 = vmatpush1.msra.mxu0 0.0
        %522 = vmatprep.subr.mxu0 0.0
        %523 = vmatpush1.msra.mxu0 0.0
        %524 = vmatprep.subr.mxu0 0.0
        %525 = vmatpush1.msra.mxu0 0.0
        %526 = vmatprep.subr.mxu0 0.0
        %527 = vmatpush1.msra.mxu0 0.0
        %528 = vmatprep.subr.mxu0 0.0
        %529 = vmatpush1.msra.mxu0 0.0
        %530 = vmatprep.subr.mxu0 0.0
        %531 = vmatpush1.msra.mxu0 0.0
        %532 = vmatprep.subr.mxu0 0.0
        %533 = vmatpush1.msra.mxu0 0.0
        %534 = vmatprep.subr.mxu0 0.0
        %535 = vmatpush1.msra.mxu0 0.0
        %536 = vmatprep.subr.mxu0 0.0
        %537 = vmatpush1.msra.mxu0 0.0
        %538 = vmatprep.subr.mxu0 0.0
        %539 = vmatpush1.msra.mxu0 0.0
        %540 = vmatprep.subr.mxu0 0.0
        %541 = vmatpush1.msra.mxu0 0.0
        %542 = vmatprep.subr.mxu0 0.0
        %543 = vmatpush1.msra.mxu0 0.0
        %544 = vmatprep.subr.mxu0 0.0
        %545 = vmatpush1.msra.mxu0 0.0
        %546 = vmatprep.subr.mxu0 0.0
        %547 = vmatpush1.msra.mxu0 0.0
        %548 = vmatprep.subr.mxu0 0.0
        %549 = vmatpush1.msra.mxu0 0.0
        %550 = vmatprep.subr.mxu0 0.0
        %551 = vmatpush1.msra.mxu0 0.0
        %552 = vmatprep.subr.mxu0 0.0
        %553 = vmatpush1.msra.mxu0 0.0
        %554 = vmatprep.subr.mxu0 0.0
        %555 = vmatpush1.msra.mxu0 0.0
        %556 = vmatprep.mubr.f32.mxu0 0.0
        %557 = vmatmul.mubr.f32.gmra.mrb[0].mxu0 %v484
        %v558 = vpop.f32.mrb[0].mxu0
        %v559 = vadd.f32 0.0, %v558
        %v560 = vpop.f32.mrb[0].mxu0
        %v561 = vadd.f32 0.0, %v560
        %562 = vdwg.mxu0
        %v563 = vadd.f32 %v455, %v559
        %v564 = vadd.f32 %v457, %v561
        %565 = vrot.lane.b32.xlu0 %v245, 1
        %v566 = vpop.permute.xlu0 %565
        %567 = vrot.lane.b32.xlu0 %v247, 1
        %v568 = vpop.permute.xlu0 %567
        %vm569 = vcmp.lt.s32.totalorder %v254, 1
        %v570 = vsel %vm569, %v566, %v568
        %v571 = vsel %vm569, %v568, %v566
        %s572 = scalar_lea.vmem %s4, 6
        %v573 = vld [vmem:[%s572] sm:$0x3]
        %v575 = vlaneseq
        %v576 = vshrl.u32 %v575, 7
        %v577 = vsub.s32 0, %v576
        %v578 = vrot.slane %v573, %v577
        %v579 = vlaneseq
        %v580 = vshrl.u32 %v579, 7
        %v581 = vsub.s32 1, %v580
        %v582 = vrot.slane %v573, %v581
        %v585 = vmul.f32 %v571, %v578
        %v586 = vmul.f32 %v570, %v582
        %s587 = scalar_lea.vmem %s2, 12
        %v588 = vld [vmem:[%s587] sm:$0xf]
        %s589 = scalar_lea.vmem %s4, 8
        %v590 = vld [vmem:[%s589] sm:$0x3]
        %v592 = vlaneseq
        %v593 = vshrl.u32 %v592, 7
        %v594 = vsub.s32 0, %v593
        %v595 = vrot.slane %v590, %v594
        %v596 = vlaneseq
        %v597 = vshrl.u32 %v596, 7
        %v598 = vsub.s32 1, %v597
        %v599 = vrot.slane %v590, %v598
        %v600 = vcombine.low %v595, %v599
        %v602 = vmul.f32 %v245, %v600
        %s603 = scalar_lea.vmem %s2, 16
        %v604 = vld [vmem:[%s603] sm:$0xf]
        %v606 = vcombine.high %v602, %v602
        %v608 = vsel %vm297, %v604, 0
        %v610 = vsel %vm301, %v602, 0
        %v612 = vsel %vm301, %v606, 0
        %614 = vmatprep.subr.mxu0 %v612
        %615 = vmatpush1.msra.mxu0 %v610
        %616 = vmatprep.subr.mxu0 0.0
        %617 = vmatpush1.msra.mxu0 0.0
        %618 = vmatprep.subr.mxu0 0.0
        %619 = vmatpush1.msra.mxu0 0.0
        %620 = vmatprep.subr.mxu0 0.0
        %621 = vmatpush1.msra.mxu0 0.0
        %622 = vmatprep.subr.mxu0 0.0
        %623 = vmatpush1.msra.mxu0 0.0
        %624 = vmatprep.subr.mxu0 0.0
        %625 = vmatpush1.msra.mxu0 0.0
        %626 = vmatprep.subr.mxu0 0.0
        %627 = vmatpush1.msra.mxu0 0.0
        %628 = vmatprep.subr.mxu0 0.0
        %629 = vmatpush1.msra.mxu0 0.0
        %630 = vmatprep.subr.mxu0 0.0
        %631 = vmatpush1.msra.mxu0 0.0
        %632 = vmatprep.subr.mxu0 0.0
        %633 = vmatpush1.msra.mxu0 0.0
        %634 = vmatprep.subr.mxu0 0.0
        %635 = vmatpush1.msra.mxu0 0.0
        %636 = vmatprep.subr.mxu0 0.0
        %637 = vmatpush1.msra.mxu0 0.0
        %638 = vmatprep.subr.mxu0 0.0
        %639 = vmatpush1.msra.mxu0 0.0
        %640 = vmatprep.subr.mxu0 0.0
        %641 = vmatpush1.msra.mxu0 0.0
        %642 = vmatprep.subr.mxu0 0.0
        %643 = vmatpush1.msra.mxu0 0.0
        %644 = vmatprep.subr.mxu0 0.0
        %645 = vmatpush1.msra.mxu0 0.0
        %646 = vmatprep.subr.mxu0 0.0
        %647 = vmatpush1.msra.mxu0 0.0
        %648 = vmatprep.subr.mxu0 0.0
        %649 = vmatpush1.msra.mxu0 0.0
        %650 = vmatprep.subr.mxu0 0.0
        %651 = vmatpush1.msra.mxu0 0.0
        %652 = vmatprep.subr.mxu0 0.0
        %653 = vmatpush1.msra.mxu0 0.0
        %654 = vmatprep.subr.mxu0 0.0
        %655 = vmatpush1.msra.mxu0 0.0
        %656 = vmatprep.subr.mxu0 0.0
        %657 = vmatpush1.msra.mxu0 0.0
        %658 = vmatprep.subr.mxu0 0.0
        %659 = vmatpush1.msra.mxu0 0.0
        %660 = vmatprep.subr.mxu0 0.0
        %661 = vmatpush1.msra.mxu0 0.0
        %662 = vmatprep.subr.mxu0 0.0
        %663 = vmatpush1.msra.mxu0 0.0
        %664 = vmatprep.subr.mxu0 0.0
        %665 = vmatpush1.msra.mxu0 0.0
        %666 = vmatprep.subr.mxu0 0.0
        %667 = vmatpush1.msra.mxu0 0.0
        %668 = vmatprep.subr.mxu0 0.0
        %669 = vmatpush1.msra.mxu0 0.0
        %670 = vmatprep.subr.mxu0 0.0
        %671 = vmatpush1.msra.mxu0 0.0
        %672 = vmatprep.subr.mxu0 0.0
        %673 = vmatpush1.msra.mxu0 0.0
        %674 = vmatprep.subr.mxu0 0.0
        %675 = vmatpush1.msra.mxu0 0.0
        %676 = vmatprep.subr.mxu0 0.0
        %677 = vmatpush1.msra.mxu0 0.0
        %678 = vmatprep.mubr.f32.mxu0 0.0
        %679 = vmatmul.mubr.f32.gmra.mrb[0].mxu0 %v608
        %v680 = vpop.f32.mrb[0].mxu0
        %v681 = vadd.f32 0.0, %v680
        %v682 = vpop.f32.mrb[0].mxu0
        %v683 = vadd.f32 0.0, %v682
        %684 = vdwg.mxu0
        %v686 = vsel %vm297, %v588, 0
        %v689 = vsel %vm301, %v585, 0
        %v692 = vsel %vm301, %v586, 0
        %694 = vmatprep.subr.mxu0 %v692
        %695 = vmatpush1.msra.mxu0 %v689
        %696 = vmatprep.subr.mxu0 0.0
        %697 = vmatpush1.msra.mxu0 0.0
        %698 = vmatprep.subr.mxu0 0.0
        %699 = vmatpush1.msra.mxu0 0.0
        %700 = vmatprep.subr.mxu0 0.0
        %701 = vmatpush1.msra.mxu0 0.0
        %702 = vmatprep.subr.mxu0 0.0
        %703 = vmatpush1.msra.mxu0 0.0
        %704 = vmatprep.subr.mxu0 0.0
        %705 = vmatpush1.msra.mxu0 0.0
        %706 = vmatprep.subr.mxu0 0.0
        %707 = vmatpush1.msra.mxu0 0.0
        %708 = vmatprep.subr.mxu0 0.0
        %709 = vmatpush1.msra.mxu0 0.0
        %710 = vmatprep.subr.mxu0 0.0
        %711 = vmatpush1.msra.mxu0 0.0
        %712 = vmatprep.subr.mxu0 0.0
        %713 = vmatpush1.msra.mxu0 0.0
        %714 = vmatprep.subr.mxu0 0.0
        %715 = vmatpush1.msra.mxu0 0.0
        %716 = vmatprep.subr.mxu0 0.0
        %717 = vmatpush1.msra.mxu0 0.0
        %718 = vmatprep.subr.mxu0 0.0
        %719 = vmatpush1.msra.mxu0 0.0
        %720 = vmatprep.subr.mxu0 0.0
        %721 = vmatpush1.msra.mxu0 0.0
        %722 = vmatprep.subr.mxu0 0.0
        %723 = vmatpush1.msra.mxu0 0.0
        %724 = vmatprep.subr.mxu0 0.0
        %725 = vmatpush1.msra.mxu0 0.0
        %726 = vmatprep.subr.mxu0 0.0
        %727 = vmatpush1.msra.mxu0 0.0
        %728 = vmatprep.subr.mxu0 0.0
        %729 = vmatpush1.msra.mxu0 0.0
        %730 = vmatprep.subr.mxu0 0.0
        %731 = vmatpush1.msra.mxu0 0.0
        %732 = vmatprep.subr.mxu0 0.0
        %733 = vmatpush1.msra.mxu0 0.0
        %734 = vmatprep.subr.mxu0 0.0
        %735 = vmatpush1.msra.mxu0 0.0
        %736 = vmatprep.subr.mxu0 0.0
        %737 = vmatpush1.msra.mxu0 0.0
        %738 = vmatprep.subr.mxu0 0.0
        %739 = vmatpush1.msra.mxu0 0.0
        %740 = vmatprep.subr.mxu0 0.0
        %741 = vmatpush1.msra.mxu0 0.0
        %742 = vmatprep.subr.mxu0 0.0
        %743 = vmatpush1.msra.mxu0 0.0
        %744 = vmatprep.subr.mxu0 0.0
        %745 = vmatpush1.msra.mxu0 0.0
        %746 = vmatprep.subr.mxu0 0.0
        %747 = vmatpush1.msra.mxu0 0.0
        %748 = vmatprep.subr.mxu0 0.0
        %749 = vmatpush1.msra.mxu0 0.0
        %750 = vmatprep.subr.mxu0 0.0
        %751 = vmatpush1.msra.mxu0 0.0
        %752 = vmatprep.subr.mxu0 0.0
        %753 = vmatpush1.msra.mxu0 0.0
        %754 = vmatprep.subr.mxu0 0.0
        %755 = vmatpush1.msra.mxu0 0.0
        %756 = vmatprep.subr.mxu0 0.0
        %757 = vmatpush1.msra.mxu0 0.0
        %758 = vmatprep.mubr.f32.mxu0 0.0
        %759 = vmatmul.mubr.f32.gmra.mrb[0].mxu0 %v686
        %v760 = vpop.f32.mrb[0].mxu0
        %v761 = vadd.f32 %v681, %v760
        %v762 = vpop.f32.mrb[0].mxu0
        %v763 = vadd.f32 %v683, %v762
        %764 = vdwg.mxu0
        %765 = vrot.lane.b32.xlu0 %v245, 127
        %v766 = vpop.permute.xlu0 %765
        %767 = vrot.lane.b32.xlu0 %v247, 127
        %v768 = vpop.permute.xlu0 %767
        %vm769 = vcmp.lt.s32.totalorder %v254, 127
        %v770 = vsel %vm769, %v766, %v768
        %v771 = vsel %vm769, %v768, %v766
        %s772 = scalar_lea.vmem %s4, 10
        %v773 = vld [vmem:[%s772] sm:$0x3]
        %v775 = vlaneseq
        %v776 = vshrl.u32 %v775, 7
        %v777 = vsub.s32 0, %v776
        %v778 = vrot.slane %v773, %v777
        %v779 = vlaneseq
        %v780 = vshrl.u32 %v779, 7
        %v781 = vsub.s32 1, %v780
        %v782 = vrot.slane %v773, %v781
        %v785 = vmul.f32 %v770, %v778
        %v786 = vmul.f32 %v771, %v782
        %s787 = scalar_lea.vmem %s2, 20
        %v788 = vld [vmem:[%s787] sm:$0xf]
        %v790 = vsel %vm297, %v788, 0
        %v793 = vsel %vm301, %v785, 0
        %v796 = vsel %vm301, %v786, 0
        %798 = vmatprep.subr.mxu0 %v796
        %799 = vmatpush1.msra.mxu0 %v793
        %800 = vmatprep.subr.mxu0 0.0
        %801 = vmatpush1.msra.mxu0 0.0
        %802 = vmatprep.subr.mxu0 0.0
        %803 = vmatpush1.msra.mxu0 0.0
        %804 = vmatprep.subr.mxu0 0.0
        %805 = vmatpush1.msra.mxu0 0.0
        %806 = vmatprep.subr.mxu0 0.0
        %807 = vmatpush1.msra.mxu0 0.0
        %808 = vmatprep.subr.mxu0 0.0
        %809 = vmatpush1.msra.mxu0 0.0
        %810 = vmatprep.subr.mxu0 0.0
        %811 = vmatpush1.msra.mxu0 0.0
        %812 = vmatprep.subr.mxu0 0.0
        %813 = vmatpush1.msra.mxu0 0.0
        %814 = vmatprep.subr.mxu0 0.0
        %815 = vmatpush1.msra.mxu0 0.0
        %816 = vmatprep.subr.mxu0 0.0
        %817 = vmatpush1.msra.mxu0 0.0
        %818 = vmatprep.subr.mxu0 0.0
        %819 = vmatpush1.msra.mxu0 0.0
        %820 = vmatprep.subr.mxu0 0.0
        %821 = vmatpush1.msra.mxu0 0.0
        %822 = vmatprep.subr.mxu0 0.0
        %823 = vmatpush1.msra.mxu0 0.0
        %824 = vmatprep.subr.mxu0 0.0
        %825 = vmatpush1.msra.mxu0 0.0
        %826 = vmatprep.subr.mxu0 0.0
        %827 = vmatpush1.msra.mxu0 0.0
        %828 = vmatprep.subr.mxu0 0.0
        %829 = vmatpush1.msra.mxu0 0.0
        %830 = vmatprep.subr.mxu0 0.0
        %831 = vmatpush1.msra.mxu0 0.0
        %832 = vmatprep.subr.mxu0 0.0
        %833 = vmatpush1.msra.mxu0 0.0
        %834 = vmatprep.subr.mxu0 0.0
        %835 = vmatpush1.msra.mxu0 0.0
        %836 = vmatprep.subr.mxu0 0.0
        %837 = vmatpush1.msra.mxu0 0.0
        %838 = vmatprep.subr.mxu0 0.0
        %839 = vmatpush1.msra.mxu0 0.0
        %840 = vmatprep.subr.mxu0 0.0
        %841 = vmatpush1.msra.mxu0 0.0
        %842 = vmatprep.subr.mxu0 0.0
        %843 = vmatpush1.msra.mxu0 0.0
        %844 = vmatprep.subr.mxu0 0.0
        %845 = vmatpush1.msra.mxu0 0.0
        %846 = vmatprep.subr.mxu0 0.0
        %847 = vmatpush1.msra.mxu0 0.0
        %848 = vmatprep.subr.mxu0 0.0
        %849 = vmatpush1.msra.mxu0 0.0
        %850 = vmatprep.subr.mxu0 0.0
        %851 = vmatpush1.msra.mxu0 0.0
        %852 = vmatprep.subr.mxu0 0.0
        %853 = vmatpush1.msra.mxu0 0.0
        %854 = vmatprep.subr.mxu0 0.0
        %855 = vmatpush1.msra.mxu0 0.0
        %856 = vmatprep.subr.mxu0 0.0
        %857 = vmatpush1.msra.mxu0 0.0
        %858 = vmatprep.subr.mxu0 0.0
        %859 = vmatpush1.msra.mxu0 0.0
        %860 = vmatprep.subr.mxu0 0.0
        %861 = vmatpush1.msra.mxu0 0.0
        %862 = vmatprep.mubr.f32.mxu0 0.0
        %863 = vmatmul.mubr.f32.gmra.mrb[0].mxu0 %v790
        %v864 = vpop.f32.mrb[0].mxu0
        %v865 = vadd.f32 0.0, %v864
        %v866 = vpop.f32.mrb[0].mxu0
        %v867 = vadd.f32 0.0, %v866
        %868 = vdwg.mxu0
        %v869 = vadd.f32 %v761, %v865
        %v870 = vadd.f32 %v763, %v867
        %871 = vrot.lane.b32.xlu0 %v245, 113
        %v872 = vpop.permute.xlu0 %871
        %873 = vrot.lane.b32.xlu0 %v247, 113
        %v874 = vpop.permute.xlu0 %873
        %vm875 = vcmp.lt.s32.totalorder %v254, 113
        %v876 = vsel %vm875, %v872, %v874
        %v877 = vsel %vm875, %v874, %v872
        %s878 = scalar_lea.vmem %s4, 12
        %v879 = vld [vmem:[%s878] sm:$0x3]
        %v881 = vlaneseq
        %v882 = vshrl.u32 %v881, 7
        %v883 = vsub.s32 0, %v882
        %v884 = vrot.slane %v879, %v883
        %v885 = vlaneseq
        %v886 = vshrl.u32 %v885, 7
        %v887 = vsub.s32 1, %v886
        %v888 = vrot.slane %v879, %v887
        %v891 = vmul.f32 %v876, %v884
        %v892 = vmul.f32 %v877, %v888
        %s893 = scalar_lea.vmem %s2, 24
        %v894 = vld [vmem:[%s893] sm:$0xf]
        %895 = vrot.lane.b32.xlu0 %v245, 112
        %v896 = vpop.permute.xlu0 %895
        %897 = vrot.lane.b32.xlu0 %v247, 112
        %v898 = vpop.permute.xlu0 %897
        %vm899 = vcmp.lt.s32.totalorder %v254, 112
        %v900 = vsel %vm899, %v896, %v898
        %v901 = vsel %vm899, %v898, %v896
        %s902 = scalar_lea.vmem %s4, 14
        %v903 = vld [vmem:[%s902] sm:$0x3]
        %v905 = vlaneseq
        %v906 = vshrl.u32 %v905, 7
        %v907 = vsub.s32 0, %v906
        %v908 = vrot.slane %v903, %v907
        %v909 = vlaneseq
        %v910 = vshrl.u32 %v909, 7
        %v911 = vsub.s32 1, %v910
        %v912 = vrot.slane %v903, %v911
        %v915 = vmul.f32 %v900, %v908
        %v916 = vmul.f32 %v901, %v912
        %s917 = scalar_lea.vmem %s2, 28
        %v918 = vld [vmem:[%s917] sm:$0xf]
        %v920 = vsel %vm297, %v918, 0
        %v923 = vsel %vm301, %v915, 0
        %v926 = vsel %vm301, %v916, 0
        %928 = vmatprep.subr.mxu0 %v926
        %929 = vmatpush1.msra.mxu0 %v923
        %930 = vmatprep.subr.mxu0 0.0
        %931 = vmatpush1.msra.mxu0 0.0
        %932 = vmatprep.subr.mxu0 0.0
        %933 = vmatpush1.msra.mxu0 0.0
        %934 = vmatprep.subr.mxu0 0.0
        %935 = vmatpush1.msra.mxu0 0.0
        %936 = vmatprep.subr.mxu0 0.0
        %937 = vmatpush1.msra.mxu0 0.0
        %938 = vmatprep.subr.mxu0 0.0
        %939 = vmatpush1.msra.mxu0 0.0
        %940 = vmatprep.subr.mxu0 0.0
        %941 = vmatpush1.msra.mxu0 0.0
        %942 = vmatprep.subr.mxu0 0.0
        %943 = vmatpush1.msra.mxu0 0.0
        %944 = vmatprep.subr.mxu0 0.0
        %945 = vmatpush1.msra.mxu0 0.0
        %946 = vmatprep.subr.mxu0 0.0
        %947 = vmatpush1.msra.mxu0 0.0
        %948 = vmatprep.subr.mxu0 0.0
        %949 = vmatpush1.msra.mxu0 0.0
        %950 = vmatprep.subr.mxu0 0.0
        %951 = vmatpush1.msra.mxu0 0.0
        %952 = vmatprep.subr.mxu0 0.0
        %953 = vmatpush1.msra.mxu0 0.0
        %954 = vmatprep.subr.mxu0 0.0
        %955 = vmatpush1.msra.mxu0 0.0
        %956 = vmatprep.subr.mxu0 0.0
        %957 = vmatpush1.msra.mxu0 0.0
        %958 = vmatprep.subr.mxu0 0.0
        %959 = vmatpush1.msra.mxu0 0.0
        %960 = vmatprep.subr.mxu0 0.0
        %961 = vmatpush1.msra.mxu0 0.0
        %962 = vmatprep.subr.mxu0 0.0
        %963 = vmatpush1.msra.mxu0 0.0
        %964 = vmatprep.subr.mxu0 0.0
        %965 = vmatpush1.msra.mxu0 0.0
        %966 = vmatprep.subr.mxu0 0.0
        %967 = vmatpush1.msra.mxu0 0.0
        %968 = vmatprep.subr.mxu0 0.0
        %969 = vmatpush1.msra.mxu0 0.0
        %970 = vmatprep.subr.mxu0 0.0
        %971 = vmatpush1.msra.mxu0 0.0
        %972 = vmatprep.subr.mxu0 0.0
        %973 = vmatpush1.msra.mxu0 0.0
        %974 = vmatprep.subr.mxu0 0.0
        %975 = vmatpush1.msra.mxu0 0.0
        %976 = vmatprep.subr.mxu0 0.0
        %977 = vmatpush1.msra.mxu0 0.0
        %978 = vmatprep.subr.mxu0 0.0
        %979 = vmatpush1.msra.mxu0 0.0
        %980 = vmatprep.subr.mxu0 0.0
        %981 = vmatpush1.msra.mxu0 0.0
        %982 = vmatprep.subr.mxu0 0.0
        %983 = vmatpush1.msra.mxu0 0.0
        %984 = vmatprep.subr.mxu0 0.0
        %985 = vmatpush1.msra.mxu0 0.0
        %986 = vmatprep.subr.mxu0 0.0
        %987 = vmatpush1.msra.mxu0 0.0
        %988 = vmatprep.subr.mxu0 0.0
        %989 = vmatpush1.msra.mxu0 0.0
        %990 = vmatprep.subr.mxu0 0.0
        %991 = vmatpush1.msra.mxu0 0.0
        %992 = vmatprep.mubr.f32.mxu0 0.0
        %993 = vmatmul.mubr.f32.gmra.mrb[0].mxu0 %v920
        %v994 = vpop.f32.mrb[0].mxu0
        %v995 = vadd.f32 0.0, %v994
        %v996 = vpop.f32.mrb[0].mxu0
        %v997 = vadd.f32 0.0, %v996
        %998 = vdwg.mxu0
        %v1000 = vsel %vm297, %v894, 0
        %v1003 = vsel %vm301, %v891, 0
        %v1006 = vsel %vm301, %v892, 0
        %1008 = vmatprep.subr.mxu0 %v1006
        %1009 = vmatpush1.msra.mxu0 %v1003
        %1010 = vmatprep.subr.mxu0 0.0
        %1011 = vmatpush1.msra.mxu0 0.0
        %1012 = vmatprep.subr.mxu0 0.0
        %1013 = vmatpush1.msra.mxu0 0.0
        %1014 = vmatprep.subr.mxu0 0.0
        %1015 = vmatpush1.msra.mxu0 0.0
        %1016 = vmatprep.subr.mxu0 0.0
        %1017 = vmatpush1.msra.mxu0 0.0
        %1018 = vmatprep.subr.mxu0 0.0
        %1019 = vmatpush1.msra.mxu0 0.0
        %1020 = vmatprep.subr.mxu0 0.0
        %1021 = vmatpush1.msra.mxu0 0.0
        %1022 = vmatprep.subr.mxu0 0.0
        %1023 = vmatpush1.msra.mxu0 0.0
        %1024 = vmatprep.subr.mxu0 0.0
        %1025 = vmatpush1.msra.mxu0 0.0
        %1026 = vmatprep.subr.mxu0 0.0
        %1027 = vmatpush1.msra.mxu0 0.0
        %1028 = vmatprep.subr.mxu0 0.0
        %1029 = vmatpush1.msra.mxu0 0.0
        %1030 = vmatprep.subr.mxu0 0.0
        %1031 = vmatpush1.msra.mxu0 0.0
        %1032 = vmatprep.subr.mxu0 0.0
        %1033 = vmatpush1.msra.mxu0 0.0
        %1034 = vmatprep.subr.mxu0 0.0
        %1035 = vmatpush1.msra.mxu0 0.0
        %1036 = vmatprep.subr.mxu0 0.0
        %1037 = vmatpush1.msra.mxu0 0.0
        %1038 = vmatprep.subr.mxu0 0.0
        %1039 = vmatpush1.msra.mxu0 0.0
        %1040 = vmatprep.subr.mxu0 0.0
        %1041 = vmatpush1.msra.mxu0 0.0
        %1042 = vmatprep.subr.mxu0 0.0
        %1043 = vmatpush1.msra.mxu0 0.0
        %1044 = vmatprep.subr.mxu0 0.0
        %1045 = vmatpush1.msra.mxu0 0.0
        %1046 = vmatprep.subr.mxu0 0.0
        %1047 = vmatpush1.msra.mxu0 0.0
        %1048 = vmatprep.subr.mxu0 0.0
        %1049 = vmatpush1.msra.mxu0 0.0
        %1050 = vmatprep.subr.mxu0 0.0
        %1051 = vmatpush1.msra.mxu0 0.0
        %1052 = vmatprep.subr.mxu0 0.0
        %1053 = vmatpush1.msra.mxu0 0.0
        %1054 = vmatprep.subr.mxu0 0.0
        %1055 = vmatpush1.msra.mxu0 0.0
        %1056 = vmatprep.subr.mxu0 0.0
        %1057 = vmatpush1.msra.mxu0 0.0
        %1058 = vmatprep.subr.mxu0 0.0
        %1059 = vmatpush1.msra.mxu0 0.0
        %1060 = vmatprep.subr.mxu0 0.0
        %1061 = vmatpush1.msra.mxu0 0.0
        %1062 = vmatprep.subr.mxu0 0.0
        %1063 = vmatpush1.msra.mxu0 0.0
        %1064 = vmatprep.subr.mxu0 0.0
        %1065 = vmatpush1.msra.mxu0 0.0
        %1066 = vmatprep.subr.mxu0 0.0
        %1067 = vmatpush1.msra.mxu0 0.0
        %1068 = vmatprep.subr.mxu0 0.0
        %1069 = vmatpush1.msra.mxu0 0.0
        %1070 = vmatprep.subr.mxu0 0.0
        %1071 = vmatpush1.msra.mxu0 0.0
        %1072 = vmatprep.mubr.f32.mxu0 0.0
        %1073 = vmatmul.mubr.f32.gmra.mrb[0].mxu0 %v1000
        %v1074 = vpop.f32.mrb[0].mxu0
        %v1075 = vadd.f32 %v995, %v1074
        %v1076 = vpop.f32.mrb[0].mxu0
        %v1077 = vadd.f32 %v997, %v1076
        %1078 = vdwg.mxu0
        %1079 = vrot.lane.b32.xlu0 %v245, 111
        %v1080 = vpop.permute.xlu0 %1079
        %1081 = vrot.lane.b32.xlu0 %v247, 111
        %v1082 = vpop.permute.xlu0 %1081
        %vm1083 = vcmp.lt.s32.totalorder %v254, 111
        %v1084 = vsel %vm1083, %v1080, %v1082
        %v1085 = vsel %vm1083, %v1082, %v1080
        %s1086 = scalar_lea.vmem %s4, 16
        %v1087 = vld [vmem:[%s1086] sm:$0x3]
        %v1089 = vlaneseq
        %v1090 = vshrl.u32 %v1089, 7
        %v1091 = vsub.s32 0, %v1090
        %v1092 = vrot.slane %v1087, %v1091
        %v1093 = vlaneseq
        %v1094 = vshrl.u32 %v1093, 7
        %v1095 = vsub.s32 1, %v1094
        %v1096 = vrot.slane %v1087, %v1095
        %v1099 = vmul.f32 %v1084, %v1092
        %v1100 = vmul.f32 %v1085, %v1096
        %s1101 = scalar_lea.vmem %s2, 32
        %v1102 = vld [vmem:[%s1101] sm:$0xf]
        %v1104 = vsel %vm297, %v1102, 0
        %v1107 = vsel %vm301, %v1099, 0
        %v1110 = vsel %vm301, %v1100, 0
        %1112 = vmatprep.subr.mxu0 %v1110
        %1113 = vmatpush1.msra.mxu0 %v1107
        %1114 = vmatprep.subr.mxu0 0.0
        %1115 = vmatpush1.msra.mxu0 0.0
        %1116 = vmatprep.subr.mxu0 0.0
        %1117 = vmatpush1.msra.mxu0 0.0
        %1118 = vmatprep.subr.mxu0 0.0
        %1119 = vmatpush1.msra.mxu0 0.0
        %1120 = vmatprep.subr.mxu0 0.0
        %1121 = vmatpush1.msra.mxu0 0.0
        %1122 = vmatprep.subr.mxu0 0.0
        %1123 = vmatpush1.msra.mxu0 0.0
        %1124 = vmatprep.subr.mxu0 0.0
        %1125 = vmatpush1.msra.mxu0 0.0
        %1126 = vmatprep.subr.mxu0 0.0
        %1127 = vmatpush1.msra.mxu0 0.0
        %1128 = vmatprep.subr.mxu0 0.0
        %1129 = vmatpush1.msra.mxu0 0.0
        %1130 = vmatprep.subr.mxu0 0.0
        %1131 = vmatpush1.msra.mxu0 0.0
        %1132 = vmatprep.subr.mxu0 0.0
        %1133 = vmatpush1.msra.mxu0 0.0
        %1134 = vmatprep.subr.mxu0 0.0
        %1135 = vmatpush1.msra.mxu0 0.0
        %1136 = vmatprep.subr.mxu0 0.0
        %1137 = vmatpush1.msra.mxu0 0.0
        %1138 = vmatprep.subr.mxu0 0.0
        %1139 = vmatpush1.msra.mxu0 0.0
        %1140 = vmatprep.subr.mxu0 0.0
        %1141 = vmatpush1.msra.mxu0 0.0
        %1142 = vmatprep.subr.mxu0 0.0
        %1143 = vmatpush1.msra.mxu0 0.0
        %1144 = vmatprep.subr.mxu0 0.0
        %1145 = vmatpush1.msra.mxu0 0.0
        %1146 = vmatprep.subr.mxu0 0.0
        %1147 = vmatpush1.msra.mxu0 0.0
        %1148 = vmatprep.subr.mxu0 0.0
        %1149 = vmatpush1.msra.mxu0 0.0
        %1150 = vmatprep.subr.mxu0 0.0
        %1151 = vmatpush1.msra.mxu0 0.0
        %1152 = vmatprep.subr.mxu0 0.0
        %1153 = vmatpush1.msra.mxu0 0.0
        %1154 = vmatprep.subr.mxu0 0.0
        %1155 = vmatpush1.msra.mxu0 0.0
        %1156 = vmatprep.subr.mxu0 0.0
        %1157 = vmatpush1.msra.mxu0 0.0
        %1158 = vmatprep.subr.mxu0 0.0
        %1159 = vmatpush1.msra.mxu0 0.0
        %1160 = vmatprep.subr.mxu0 0.0
        %1161 = vmatpush1.msra.mxu0 0.0
        %1162 = vmatprep.subr.mxu0 0.0
        %1163 = vmatpush1.msra.mxu0 0.0
        %1164 = vmatprep.subr.mxu0 0.0
        %1165 = vmatpush1.msra.mxu0 0.0
        %1166 = vmatprep.subr.mxu0 0.0
        %1167 = vmatpush1.msra.mxu0 0.0
        %1168 = vmatprep.subr.mxu0 0.0
        %1169 = vmatpush1.msra.mxu0 0.0
        %1170 = vmatprep.subr.mxu0 0.0
        %1171 = vmatpush1.msra.mxu0 0.0
        %1172 = vmatprep.subr.mxu0 0.0
        %1173 = vmatpush1.msra.mxu0 0.0
        %1174 = vmatprep.subr.mxu0 0.0
        %1175 = vmatpush1.msra.mxu0 0.0
        %1176 = vmatprep.mubr.f32.mxu0 0.0
        %1177 = vmatmul.mubr.f32.gmra.mrb[0].mxu0 %v1104
        %v1178 = vpop.f32.mrb[0].mxu0
        %v1179 = vadd.f32 0.0, %v1178
        %v1180 = vpop.f32.mrb[0].mxu0
        %v1181 = vadd.f32 0.0, %v1180
        %1182 = vdwg.mxu0
        %v1183 = vadd.f32 %v1075, %v1179
        %v1184 = vadd.f32 %v1077, %v1181
        %v1185 = vadd.f32 %v563, %v869
        %v1186 = vadd.f32 %v564, %v870
        %v1187 = vadd.f32 %v1185, %v1183
        %v1188 = vadd.f32 %v1186, %v1184
        %v1189 = vld [vmem:[%s3] sm:$0xf]
        %1191 = vset.pattern.permute.xlu0 0
        %1192 = vperm.xlu0 %1191, %v1189
        %v1193 = vpop.permute.xlu0 %1192
        %v1195 = vadd.f32 %v1187, %v1193
        %v1196 = vadd.f32 %v1188, %v1193
        %v1199 = vcombine.low %v1195, %v1196
        %1201 = vst [vmem:[%s232] sm:$0xff] %v1199
        %s1202 = sand.u32 %s142, 1
        %s1203 = scalar_lea.sflag [#allocation3], %s1202
        %s1204 = sand.u32 %s142, 1
        %s1205 = smul.addr %s1204, 8
        %s1206 = scalar_lea.vmem [#allocation2], %s1205
        // Predicated region
        $region41: #{tpu_custom_call.1} parent=39 // pred_check
          %p1207 = pneg %p152
        $region42: #{tpu_custom_call.1} parent=39 // pred_check_branch
          %1209 = sbr.rel (%p1207) target = $region44
        $region43: #{tpu_custom_call.1} parent=39 // pred_region
          %s1211 = ssub.s32 128, 128
          %1212 = vsyncadd %s1203, %s1211
          %s1213 = smul.addr %s19, 2
          %s1214 = smul.addr %s1213, 64
          %s1215 = scalar_lea.hbm %s5, %s1214
          %s1217 = sshll.u32 %s1206, 4
          %s1218 = int_to_ptr.vmem [resolvable:$true] %s1217
          %1220 = dma.vmem_to_hbm [thread:$0]  %s1218, 128, %s1215, %s1203
        $region44: #{tpu_custom_call.1} parent=39 // pred_fallthru
          _
      $region40: #{tpu_custom_call.1} parent=5 // pred_fallthru
        _
      %p1221 = scmp.le.s32.totalorder 2, %s14
      // Predicated region
      $region45: #{tpu_custom_call.1} parent=5 // pred_check
        %p1222 = pneg %p1221
      $region46: #{tpu_custom_call.1} parent=5 // pred_check_branch
        %1224 = sbr.rel (%p1222) target = $region48
      $region47: #{tpu_custom_call.1} parent=5 // pred_region
        %s1225 = ssub.s32 %s14, 2
        // Predicated region
        $region49: #{tpu_custom_call.1} parent=47 // pred_check
          %p1226 = pneg %p158
        $region50: #{tpu_custom_call.1} parent=47 // pred_check_branch
          %1228 = sbr.rel (%p1226) target = $region52
        $region51: #{tpu_custom_call.1} parent=47 // pred_region
          %s1229 = sand.u32 %s143, 1
          %s1230 = scalar_lea.sflag [#allocation3], %s1229
          %s1231 = sand.u32 %s143, 1
          %s1232 = smul.addr %s1231, 8
          %s1233 = scalar_lea.vmem [#allocation2], %s1232
          %1234 = dma.done %s1230, 128
        $region52: #{tpu_custom_call.1} parent=47 // pred_fallthru
          _
      $region48: #{tpu_custom_call.1} parent=5 // pred_fallthru
        _
    $region6: #{tpu_custom_call.1} parent=1 // loop_footer
      %s18 = sadd.s32 1, %s14
    $region7: #{tpu_custom_call.1} parent=1 // loop_footer_branch
      %13 = sbr.rel target = $region3
    $region8: #{tpu_custom_call.1} parent=1 // loop_exit
      _
    %1235 = vsyncpa [#allocation3], 1
    %s1236 = scalar_lea.sflag [#allocation3], 1
    %1237 = vsyncpa %s1236, 1

</llo_original>
